<compile_context>
chip_gen: v6e
topology: v6e:2x2x1
jax: 0.10.0
libtpu: 0.0.40
codegen_flags: <defaults>
</compile_context>

<pallas_src>
import jax
import jax.numpy as jnp
from jax.experimental import pallas as pl
from jax.experimental.pallas import tpu as pltpu


def _round_up(x, m):
    return ((x + m - 1) // m) * m


# ---------------------------------------------------------------------------
# Static layout of the packed parameter slab: one f32 (P_ROWS, LANE) buffer.
# ---------------------------------------------------------------------------
class QvalLayout:
    def __init__(self, n_features_extractor, n_action, last_hidden):
        self.F = n_features_extractor          # state feature width
        self.A = n_action                      # action width / q output width
        self.H = last_hidden                   # hidden width (unpadded)
        # lane-dense width for hidden activations and the q output
        self.LANE = max(128, _round_up(last_hidden, 128), _round_up(n_action, 128))
        self.F_PAD = _round_up(self.F, 8)      # sublane-aligned row counts
        self.A_ROWS = _round_up(self.A, 8)
        self.OFF_W1S = 0                                   # (F,  LANE)  W1 state rows
        self.OFF_W1A = self.F_PAD                          # (A,  LANE)  W1 action rows
        self.OFF_W2 = self.F_PAD + self.A_ROWS             # (LANE, LANE)
        self.OFF_W3 = self.OFF_W2 + self.LANE              # (LANE, LANE)
        self.OFF_WQ = self.OFF_W3 + self.LANE              # (LANE, LANE)
        self.OFF_B = self.OFF_WQ + self.LANE                # 4 bias rows (padded to 8)
        self.P_ROWS = self.OFF_B + 8


# ---------------------------------------------------------------------------
# Fused kernel: concat -> fc1 -> relu -> fc2 -> relu -> fc3 -> relu -> q head
# ---------------------------------------------------------------------------
def _make_qval_kernel(lay: QvalLayout):
    F, A, LANE = lay.F, lay.A, lay.LANE

    def kernel(xs_ref, xa_ref, p_ref, o_ref):
        xs = xs_ref[...]                                     # (TB, F)
        xa = xa_ref[...]                                     # (TB, A)

        # --- layer 1: fused concat via split W1 ---------------------------------
        w1s = p_ref[lay.OFF_W1S:lay.OFF_W1S + F, :]          # (F, LANE)
        w1a = p_ref[lay.OFF_W1A:lay.OFF_W1A + A, :]          # (A, LANE)
        b1 = p_ref[lay.OFF_B + 0:lay.OFF_B + 1, :]           # (1, LANE)
        h = (jnp.dot(xs, w1s, preferred_element_type=jnp.float32)
             + jnp.dot(xa, w1a, preferred_element_type=jnp.float32)
             + b1)
        h = jnp.maximum(h, 0.0)

        # --- layer 2 ------------------------------------------------------------
        w2 = p_ref[lay.OFF_W2:lay.OFF_W2 + LANE, :]          # (LANE, LANE)
        b2 = p_ref[lay.OFF_B + 1:lay.OFF_B + 2, :]
        h = jnp.maximum(
            jnp.dot(h, w2, preferred_element_type=jnp.float32) + b2, 0.0)

        # --- layer 3 ------------------------------------------------------------
        w3 = p_ref[lay.OFF_W3:lay.OFF_W3 + LANE, :]
        b3 = p_ref[lay.OFF_B + 2:lay.OFF_B + 3, :]
        h = jnp.maximum(
            jnp.dot(h, w3, preferred_element_type=jnp.float32) + b3, 0.0)

        # --- NormedLinear q head (norm scaling is baked into wq at init) --------
        wq = p_ref[lay.OFF_WQ:lay.OFF_WQ + LANE, :]
        bq = p_ref[lay.OFF_B + 3:lay.OFF_B + 4, :]
        q = jnp.dot(h, wq, preferred_element_type=jnp.float32) + bq
        o_ref[...] = q.astype(o_ref.dtype)                   # lane-dense (TB, LANE)

    return kernel


# ---------------------------------------------------------------------------
# JAX wrapper reproducing QvalModel.forward
# ---------------------------------------------------------------------------
def qval_forward(extract_state, action, packed_params, layout: QvalLayout,
                 mode="batch"):
    squeeze = False
    if mode != "batch":
        # single-sample path: torch.cat along dim 0 of 1-D tensors
        extract_state = extract_state[None, :]
        action = action[None, :]
        squeeze = True

    B = extract_state.shape[0]
    F, A, LANE = layout.F, layout.A, layout.LANE

    TB = min(512, _round_up(B, 8))             # large row tile, multiple of 8
    grid = (pl.cdiv(B, TB),)

    flops = 2 * B * LANE * (F + A + 3 * LANE)
    bytes_accessed = 4 * (B * (F + A) + layout.P_ROWS * LANE + B * LANE)
    cost = pl.CostEstimate(flops=flops, transcendentals=0,
                           bytes_accessed=bytes_accessed)

    out_padded = pl.pallas_call(
        _make_qval_kernel(layout),
        out_shape=jax.ShapeDtypeStruct((B, LANE), jnp.float32),
        grid=grid,
        in_specs=[
            pl.BlockSpec((TB, F), lambda i: (i, 0)),                 # extract_state
            pl.BlockSpec((TB, A), lambda i: (i, 0)),                 # action
            pl.BlockSpec((layout.P_ROWS, LANE), lambda i: (0, 0)),   # packed params (VMEM-resident)
        ],
        out_specs=pl.BlockSpec((TB, LANE), lambda i: (i, 0)),
        compiler_params=pltpu.CompilerParams(
            dimension_semantics=("parallel",)),
        cost_estimate=cost,
    )(extract_state, action, packed_params)

    out = out_padded[:, :A]                    # strip lane padding
    if squeeze:
        out = out[0]
    return out


# ---------------------------------------------------------------------------
# Deterministic parameter construction (mirrors nn.Linear / NormedLinear init)
# ---------------------------------------------------------------------------
def init_linear(key, fan_in, fan_out):
    """PyTorch-style nn.Linear init: U(-1/sqrt(fan_in), 1/sqrt(fan_in)).
    Weights stored transposed relative to PyTorch: (in, out)."""
    kw, kb = jax.random.split(key)
    bound = 1.0 / (fan_in ** 0.5)
    w = jax.random.uniform(kw, (fan_in, fan_out), jnp.float32, -bound, bound)
    b = jax.random.uniform(kb, (fan_out,), jnp.float32, -bound, bound)
    return w, b


def make_params(key, n_features_extractor, n_action, last_hidden, q_scale=0.1):
    k1, k2, k3, k4 = jax.random.split(key, 4)
    w1, b1 = init_linear(k1, n_features_extractor + n_action, last_hidden)
    w2, b2 = init_linear(k2, last_hidden, last_hidden)
    w3, b3 = init_linear(k3, last_hidden, last_hidden)
    wq, bq = init_linear(k4, last_hidden, n_action)
    # NormedLinear: scale each output unit's weight vector (PyTorch dim=1 of the
    # (out, in) weight) by q_scale / ||.||_2.  In (in, out) layout that is a
    # per-column scale.
    col_norm = jnp.linalg.norm(wq, axis=0, keepdims=True)   # (1, n_action)
    wq = wq * (q_scale / col_norm)
    return (w1, b1, w2, b2, w3, b3, wq, bq)


def pack_params(params, layout: QvalLayout):
    """Pack all weights/biases into one zero-padded (P_ROWS, LANE) f32 slab."""
    w1, b1, w2, b2, w3, b3, wq, bq = params
    F, A, H, LANE = layout.F, layout.A, layout.H, layout.LANE
    slab = jnp.zeros((layout.P_ROWS, LANE), jnp.float32)
    slab = slab.at[layout.OFF_W1S:layout.OFF_W1S + F, :H].set(w1[:F])       # state half of W1
    slab = slab.at[layout.OFF_W1A:layout.OFF_W1A + A, :H].set(w1[F:F + A])  # action half of W1
    slab = slab.at[layout.OFF_W2:layout.OFF_W2 + H, :H].set(w2)
    slab = slab.at[layout.OFF_W3:layout.OFF_W3 + H, :H].set(w3)
    slab = slab.at[layout.OFF_WQ:layout.OFF_WQ + H, :A].set(wq)
    slab = slab.at[layout.OFF_B + 0, :H].set(b1)
    slab = slab.at[layout.OFF_B + 1, :H].set(b2)
    slab = slab.at[layout.OFF_B + 2, :H].set(b3)
    slab = slab.at[layout.OFF_B + 3, :A].set(bq)
    return slab


# ---------------------------------------------------------------------------
# Pure-JAX reference for sanity checking
# ---------------------------------------------------------------------------
def qval_ref(extract_state, action, params, mode="batch"):
    concat_dim = 1 if mode == "batch" else 0
    x = jnp.concatenate((extract_state, action), axis=concat_dim)
    w1, b1, w2, b2, w3, b3, wq, bq = params
    h1 = jax.nn.relu(x @ w1 + b1)
    h2 = jax.nn.relu(h1 @ w2 + b2)
    h3 = jax.nn.relu(h2 @ w3 + b3)
    return h3 @ wq + bq


if __name__ == "__main__":
    # Config implied by the module:
    #   n_hidden=16, n_rnn_layers=1, rnn_directions=1 -> feature_extractor=16
    #   n_action=4                                     -> last_hidden=32
    batch = 2
    n_hidden, n_layers, directions = 16, 1, 1
    n_action = 4
    feature_extractor = n_hidden * n_layers * directions        # 16
    last_hidden = feature_extractor * 2                         # 32

    layout = QvalLayout(feature_extractor, n_action, last_hidden)

    key = jax.random.PRNGKey(0)
    kp, ks, ka, ks2, ka2 = jax.random.split(key, 5)

    params = make_params(kp, feature_extractor, n_action, last_hidden)
    packed = pack_params(params, layout)

    extract_state = jax.random.normal(ks, (batch, feature_extractor), jnp.float32)
    action = jax.random.normal(ka, (batch, n_action), jnp.float32)

    # batch mode, small batch
    qval = jax.block_until_ready(
        qval_forward(extract_state, action, packed, layout, mode="batch"))
    ref = qval_ref(extract_state, action, params, mode="batch")
    assert qval.shape == (batch, n_action)
    assert jnp.allclose(qval, ref, atol=1e-5, rtol=1e-5), "mismatch vs reference (small batch)"

    # single-sample mode (torch.cat along dim 0 of 1-D tensors)
    q_single = jax.block_until_ready(
        qval_forward(extract_state[0], action[0], packed, layout, mode="single"))
    ref_single = qval_ref(extract_state[0], action[0], params, mode="single")
    assert q_single.shape == (n_action,)
    assert jnp.allclose(q_single, ref_single, atol=1e-5, rtol=1e-5), "mismatch vs reference (single)"

    # Larger batch to exercise the batch grid + partial trailing tile.
    big_b = 600
    es_big = jax.random.normal(ks2, (big_b, feature_extractor), jnp.float32)
    ac_big = jax.random.normal(ka2, (big_b, n_action), jnp.float32)
    q_big = jax.block_until_ready(
        qval_forward(es_big, ac_big, packed, layout, mode="batch"))
    ref_big = qval_ref(es_big, ac_big, params, mode="batch")
    assert q_big.shape == (big_b, n_action)
    assert jnp.allclose(q_big, ref_big, atol=1e-4, rtol=1e-4), "mismatch vs reference (big batch)"

    print("KERNEL_OK")
</pallas_src>

<mosaic_0001>
module attributes {stable_mosaic.version = 11 : i64} {
  func.func @kernel(%arg0: i32, %arg1: memref<8x16xf32, #tpu.memory_space<vmem>>, %arg2: memref<8x4xf32, #tpu.memory_space<vmem>>, %arg3: memref<416x128xf32, #tpu.memory_space<vmem>>, %arg4: memref<8x128xf32, #tpu.memory_space<vmem>>) attributes {dimension_semantics = [#tpu.dimension_semantics<parallel>], iteration_bounds = array<i64: 1>, scalar_prefetch = 0 : i64, scratch_operands = 0 : i64, tpu.core_type = #tpu.core_type<tc>, window_params = [{transform_indices = @transform_0, window_bounds = array<i64: 8, 16>}, {transform_indices = @transform_1, window_bounds = array<i64: 8, 4>}, {pipeline_mode = #tpu.pipeline_mode<synchronous>, transform_indices = @transform_2, window_bounds = array<i64: 416, 128>}, {transform_indices = @transform_3, window_bounds = array<i64: 8, 128>}]} {
    %c0 = arith.constant 0 : index
    %c0_0 = arith.constant 0 : index
    %0 = vector.load %arg1[%c0, %c0_0] : memref<8x16xf32, #tpu.memory_space<vmem>>, vector<8x16xf32>
    %c0_1 = arith.constant 0 : index
    %c0_2 = arith.constant 0 : index
    %1 = vector.load %arg2[%c0_1, %c0_2] : memref<8x4xf32, #tpu.memory_space<vmem>>, vector<8x4xf32>
    %c0_3 = arith.constant 0 : index
    %c0_4 = arith.constant 0 : index
    %2 = vector.load %arg3[%c0_3, %c0_4] : memref<416x128xf32, #tpu.memory_space<vmem>>, vector<16x128xf32>
    %c16 = arith.constant 16 : index
    %c0_5 = arith.constant 0 : index
    %3 = vector.load %arg3[%c16, %c0_5] : memref<416x128xf32, #tpu.memory_space<vmem>>, vector<4x128xf32>
    %c408 = arith.constant 408 : index
    %c0_6 = arith.constant 0 : index
    %4 = vector.load %arg3[%c408, %c0_6] : memref<416x128xf32, #tpu.memory_space<vmem>>, vector<1x128xf32>
    %cst = arith.constant dense<0.000000e+00> : vector<8x128xf32>
    %5 = tpu.matmul %0, %2, %cst {dimension_numbers = #tpu.dot_dimension_numbers<[1], [0], [0], [1], [0, 0, 1, 1], [], []>} : vector<8x16xf32>, vector<16x128xf32>, vector<8x128xf32> -> vector<8x128xf32>
    %cst_7 = arith.constant dense<0.000000e+00> : vector<8x128xf32>
    %6 = tpu.matmul %1, %3, %cst_7 {dimension_numbers = #tpu.dot_dimension_numbers<[1], [0], [0], [1], [0, 0, 1, 1], [], []>} : vector<8x4xf32>, vector<4x128xf32>, vector<8x128xf32> -> vector<8x128xf32>
    %7 = arith.addf %5, %6 : vector<8x128xf32>
    %8 = vector.broadcast %4 : vector<1x128xf32> to vector<8x128xf32>
    %9 = arith.addf %7, %8 : vector<8x128xf32>
    %cst_8 = arith.constant 0.000000e+00 : f32
    %10 = vector.broadcast %cst_8 : f32 to vector<8x128xf32>
    %11 = arith.maximumf %9, %10 : vector<8x128xf32>
    %c24 = arith.constant 24 : index
    %c0_9 = arith.constant 0 : index
    %12 = vector.load %arg3[%c24, %c0_9] : memref<416x128xf32, #tpu.memory_space<vmem>>, vector<128x128xf32>
    %c409 = arith.constant 409 : index
    %c0_10 = arith.constant 0 : index
    %13 = vector.load %arg3[%c409, %c0_10] : memref<416x128xf32, #tpu.memory_space<vmem>>, vector<1x128xf32>
    %cst_11 = arith.constant dense<0.000000e+00> : vector<8x128xf32>
    %14 = tpu.matmul %11, %12, %cst_11 {dimension_numbers = #tpu.dot_dimension_numbers<[1], [0], [0], [1], [0, 0, 1, 1], [], []>} : vector<8x128xf32>, vector<128x128xf32>, vector<8x128xf32> -> vector<8x128xf32>
    %15 = vector.broadcast %13 : vector<1x128xf32> to vector<8x128xf32>
    %16 = arith.addf %14, %15 : vector<8x128xf32>
    %cst_12 = arith.constant 0.000000e+00 : f32
    %17 = vector.broadcast %cst_12 : f32 to vector<8x128xf32>
    %18 = arith.maximumf %16, %17 : vector<8x128xf32>
    %c152 = arith.constant 152 : index
    %c0_13 = arith.constant 0 : index
    %19 = vector.load %arg3[%c152, %c0_13] : memref<416x128xf32, #tpu.memory_space<vmem>>, vector<128x128xf32>
    %c410 = arith.constant 410 : index
    %c0_14 = arith.constant 0 : index
    %20 = vector.load %arg3[%c410, %c0_14] : memref<416x128xf32, #tpu.memory_space<vmem>>, vector<1x128xf32>
    %cst_15 = arith.constant dense<0.000000e+00> : vector<8x128xf32>
    %21 = tpu.matmul %18, %19, %cst_15 {dimension_numbers = #tpu.dot_dimension_numbers<[1], [0], [0], [1], [0, 0, 1, 1], [], []>} : vector<8x128xf32>, vector<128x128xf32>, vector<8x128xf32> -> vector<8x128xf32>
    %22 = vector.broadcast %20 : vector<1x128xf32> to vector<8x128xf32>
    %23 = arith.addf %21, %22 : vector<8x128xf32>
    %cst_16 = arith.constant 0.000000e+00 : f32
    %24 = vector.broadcast %cst_16 : f32 to vector<8x128xf32>
    %25 = arith.maximumf %23, %24 : vector<8x128xf32>
    %c280 = arith.constant 280 : index
    %c0_17 = arith.constant 0 : index
    %26 = vector.load %arg3[%c280, %c0_17] : memref<416x128xf32, #tpu.memory_space<vmem>>, vector<128x128xf32>
    %c411 = arith.constant 411 : index
    %c0_18 = arith.constant 0 : index
    %27 = vector.load %arg3[%c411, %c0_18] : memref<416x128xf32, #tpu.memory_space<vmem>>, vector<1x128xf32>
    %cst_19 = arith.constant dense<0.000000e+00> : vector<8x128xf32>
    %28 = tpu.matmul %25, %26, %cst_19 {dimension_numbers = #tpu.dot_dimension_numbers<[1], [0], [0], [1], [0, 0, 1, 1], [], []>} : vector<8x128xf32>, vector<128x128xf32>, vector<8x128xf32> -> vector<8x128xf32>
    %29 = vector.broadcast %27 : vector<1x128xf32> to vector<8x128xf32>
    %30 = arith.addf %28, %29 : vector<8x128xf32>
    %c0_20 = arith.constant 0 : index
    %c0_21 = arith.constant 0 : index
    %31 = vector.load %arg4[%c0_20, %c0_21] : memref<8x128xf32, #tpu.memory_space<vmem>>, vector<8x128xf32>
    tpu.vector_store %arg4[%c0_20, %c0_21], %30 {strides = array<i32>} : memref<8x128xf32, #tpu.memory_space<vmem>>, vector<8x128xf32>,
    return
  }
  func.func @transform_0(%arg0: i32) -> (i32, i32) {
    %c0_i32 = arith.constant 0 : i32
    %c0_i32_0 = arith.constant 0 : i32
    return %arg0, %c0_i32 : i32, i32
  }
  func.func @transform_1(%arg0: i32) -> (i32, i32) {
    %c0_i32 = arith.constant 0 : i32
    %c0_i32_0 = arith.constant 0 : i32
    return %arg0, %c0_i32 : i32, i32
  }
  func.func @transform_2(%arg0: i32) -> (i32, i32) {
    %c0_i32 = arith.constant 0 : i32
    %c0_i32_0 = arith.constant 0 : i32
    %c0_i32_1 = arith.constant 0 : i32
    return %c0_i32, %c0_i32_0 : i32, i32
  }
  func.func @transform_3(%arg0: i32) -> (i32, i32) {
    %c0_i32 = arith.constant 0 : i32
    %c0_i32_0 = arith.constant 0 : i32
    return %arg0, %c0_i32 : i32, i32
  }
}

</mosaic_0001>

<llo_original>
// kernel: tpu_custom_call.1
$region0: #{tpu_custom_call.1}
  #allocation0 [shape = 'u32[]', space=smem, size = 0x4, offset = 0x4, fixed_abs, tag = 'smem constant byte address 0x4 - core index']
  #allocation1 [shape = 'u32[144,128]{1,0:T(1,128)}', space=vmem, size = 0x12000, scoped, tag = 'internal scratch']
  %s0 = inlined_call_operand.hbm [shape: f32[2,16], index: 0, kind: input, shape index: {}]
  %s1 = inlined_call_operand.hbm [shape: f32[2,4], index: 1, kind: input, shape index: {}]
  %s2 = inlined_call_operand.hbm [shape: f32[416,128], index: 2, kind: input, shape index: {}]
  %s3 = inlined_call_operand.hbm [shape: f32[2,128], index: 3, kind: output, shape index: {}]
  %s4 = sld [smem:[#allocation0]]
  $region34: #{tpu_custom_call.1} parent=0
    _
  %s6 = ssub.s32 1, %s4
  %s7 = scalar_select 0, %s6, %s4
  $region1: #{tpu_custom_call.1} parent=0
    #allocation2 [shape = 'u8[4096]{0}', space=vmem, size = 0x1000, scoped, tag = 'input window, operand 0, single buffered']
    #allocation3 [shape = 's32[1]{0}', space=sflag, size = 0x4, scoped, tag = 'scoped memory for tpu_custom_call.1']
    #allocation4 [shape = 's32[1]{0}', space=sflag, size = 0x4, scoped, tag = 'scoped memory for tpu_custom_call.1']
    #allocation5 [shape = 'u8[4096]{0}', space=vmem, size = 0x1000, scoped, tag = 'input window, operand 1, single buffered']
    #allocation6 [shape = 's32[1]{0}', space=sflag, size = 0x4, scoped, tag = 'scoped memory for tpu_custom_call.1']
    #allocation7 [shape = 'u8[212992]{0}', space=vmem, size = 0x34000, scoped, tag = 'input window, operand 2, single buffered']
    #allocation8 [shape = 'u8[4096]{0}', space=vmem, size = 0x1000, scoped, tag = 'output window, operand 0, single buffered']
    %8 = vsyncpa [#allocation3], 0
    %9 = vsyncpa [#allocation6], 0
    %10 = vsyncpa [#allocation4], 0
    // Predicated region
    $region2: #{tpu_custom_call.1} parent=1 // pred_check
      _
    $region3: #{tpu_custom_call.1} parent=1 // pred_check_branch
      %12 = sbr.rel (0) target = $region5
    $region4: #{tpu_custom_call.1} parent=1 // pred_region
      %s14 = ssub.s32 128, 32
      %15 = vsyncadd [#allocation3], %s14
      %s16 = sshll.u32 [#allocation2], 4
      %s17 = int_to_ptr.vmem [resolvable:$true] %s16
      %22 = dma.hbm_to_vmem [thread:$0]  %s0, 32, %s17, [#allocation3], 32, 32, 2
    $region5: #{tpu_custom_call.1} parent=1 // pred_fallthru
      _
    // Predicated region
    $region6: #{tpu_custom_call.1} parent=1 // pred_check
      _
    $region7: #{tpu_custom_call.1} parent=1 // pred_check_branch
      %24 = sbr.rel (0) target = $region9
    $region8: #{tpu_custom_call.1} parent=1 // pred_region
      %s26 = ssub.s32 128, 32
      %27 = vsyncadd [#allocation6], %s26
      %s28 = sshll.u32 [#allocation5], 4
      %s29 = int_to_ptr.vmem [resolvable:$true] %s28
      %34 = dma.hbm_to_vmem [thread:$0]  %s1, 32, %s29, [#allocation6], 32, 32, 2
    $region9: #{tpu_custom_call.1} parent=1 // pred_fallthru
      _
    // Predicated region
    $region10: #{tpu_custom_call.1} parent=1 // pred_check
      _
    $region11: #{tpu_custom_call.1} parent=1 // pred_check_branch
      %36 = sbr.rel (0) target = $region13
    $region12: #{tpu_custom_call.1} parent=1 // pred_region
      %s38 = ssub.s32 6656, 6656
      %39 = vsyncadd [#allocation6], %s38
      %s40 = sshll.u32 [#allocation7], 4
      %s41 = int_to_ptr.vmem [resolvable:$true] %s40
      %46 = dma.hbm_to_vmem [thread:$0]  %s2, 6656, %s41, [#allocation6], 128, 128, 8
    $region13: #{tpu_custom_call.1} parent=1 // pred_fallthru
      _
    // Predicated region
    $region14: #{tpu_custom_call.1} parent=1 // pred_check
      _
    $region15: #{tpu_custom_call.1} parent=1 // pred_check_branch
      %48 = sbr.rel (0) target = $region17
    $region16: #{tpu_custom_call.1} parent=1 // pred_region
      %49 = dma.done [#allocation3], 128
    $region17: #{tpu_custom_call.1} parent=1 // pred_fallthru
      _
    // Predicated region
    $region18: #{tpu_custom_call.1} parent=1 // pred_check
      _
    $region19: #{tpu_custom_call.1} parent=1 // pred_check_branch
      %51 = sbr.rel (0) target = $region21
    $region20: #{tpu_custom_call.1} parent=1 // pred_region
      %52 = dma.done [#allocation6], 128
    $region21: #{tpu_custom_call.1} parent=1 // pred_fallthru
      _
    // Predicated region
    $region22: #{tpu_custom_call.1} parent=1 // pred_check
      _
    $region23: #{tpu_custom_call.1} parent=1 // pred_check_branch
      %54 = sbr.rel (0) target = $region25
    $region24: #{tpu_custom_call.1} parent=1 // pred_region
      %55 = dma.done [#allocation6], 6656
    $region25: #{tpu_custom_call.1} parent=1 // pred_fallthru
      _
    %v56 = vld [vmem:[#allocation2] sm:$0xff]
    %v57 = vld [vmem:[#allocation5] sm:$0xff]
    %v58 = vld [vmem:[#allocation7] sm:$0xff]
    %v59 = vld [vmem:[#allocation7 + $0x8] sm:$0xff]
    %v60 = vld [vmem:[#allocation7 + $0x10] sm:$0xf]
    %v61 = vld [vmem:[#allocation7 + $0x198] sm:$0x1]
    %vm62 = vcmask 31744
    %v64 = vsel %vm62, %v57, 0
    %vm66 = vcmask 1043456
    %v68 = vsel %vm66, %v60, 0
    %70 = vmatprep.subr.mxu0 0.0
    %71 = vmatpush1.msra.mxu0 0.0
    %72 = vmatprep.subr.mxu0 0.0
    %73 = vmatpush1.msra.mxu0 0.0
    %74 = vmatprep.subr.mxu0 0.0
    %75 = vmatpush1.msra.mxu0 0.0
    %76 = vmatprep.subr.mxu0 0.0
    %77 = vmatpush1.msra.mxu0 0.0
    %78 = vmatprep.subr.mxu0 0.0
    %79 = vmatpush1.msra.mxu0 0.0
    %80 = vmatprep.subr.mxu0 0.0
    %81 = vmatpush1.msra.mxu0 0.0
    %82 = vmatprep.subr.mxu0 0.0
    %83 = vmatpush1.msra.mxu0 0.0
    %84 = vmatprep.subr.mxu0 0.0
    %85 = vmatpush1.msra.mxu0 0.0
    %86 = vmatprep.subr.mxu0 0.0
    %87 = vmatpush1.msra.mxu0 0.0
    %88 = vmatprep.subr.mxu0 0.0
    %89 = vmatpush1.msra.mxu0 0.0
    %90 = vmatprep.subr.mxu0 0.0
    %91 = vmatpush1.msra.mxu0 0.0
    %92 = vmatprep.subr.mxu0 0.0
    %93 = vmatpush1.msra.mxu0 0.0
    %94 = vmatprep.subr.mxu0 0.0
    %95 = vmatpush1.msra.mxu0 0.0
    %96 = vmatprep.subr.mxu0 0.0
    %97 = vmatpush1.msra.mxu0 0.0
    %98 = vmatprep.subr.mxu0 0.0
    %99 = vmatpush1.msra.mxu0 0.0
    %100 = vmatprep.subr.mxu0 0.0
    %101 = vmatpush1.msra.mxu0 %v68
    %102 = vmatprep.subr.mxu0 0.0
    %103 = vmatpush2.msra.mxu0 0.0
    %104 = vmatprep.subr.mxu0 0.0
    %105 = vmatpush2.msra.mxu0 0.0
    %106 = vmatprep.subr.mxu0 0.0
    %107 = vmatpush2.msra.mxu0 0.0
    %108 = vmatprep.subr.mxu0 0.0
    %109 = vmatpush2.msra.mxu0 0.0
    %110 = vmatprep.subr.mxu0 0.0
    %111 = vmatpush2.msra.mxu0 0.0
    %112 = vmatprep.subr.mxu0 0.0
    %113 = vmatpush2.msra.mxu0 0.0
    %114 = vmatprep.subr.mxu0 0.0
    %115 = vmatpush2.msra.mxu0 0.0
    %116 = vmatprep.subr.mxu0 0.0
    %117 = vmatpush2.msra.mxu0 0.0
    %118 = vmatprep.subr.mxu0 0.0
    %119 = vmatpush2.msra.mxu0 0.0
    %120 = vmatprep.subr.mxu0 0.0
    %121 = vmatpush2.msra.mxu0 0.0
    %122 = vmatprep.subr.mxu0 0.0
    %123 = vmatpush2.msra.mxu0 0.0
    %124 = vmatprep.subr.mxu0 0.0
    %125 = vmatpush2.msra.mxu0 0.0
    %126 = vmatprep.subr.mxu0 0.0
    %127 = vmatpush2.msra.mxu0 0.0
    %128 = vmatprep.subr.mxu0 0.0
    %129 = vmatpush2.msra.mxu0 0.0
    %130 = vmatprep.subr.mxu0 0.0
    %131 = vmatpush2.msra.mxu0 0.0
    %132 = vmatprep.subr.mxu0 0.0
    %133 = vmatpush2.msra.mxu0 0.0
    %134 = vmatprep.mubr.f32.mxu0 0.0
    %135 = vmatmul.mubr.f32.gmra.mxu0 %v64
    %v136 = vpop.f32.mrf.mxu0
    %v137 = vadd.f32 0.0, %v136
    %v138 = vpop.f32.mrf.mxu0
    %139 = vdwg.mxu0
    %vm140 = vcmask 130048
    %v142 = vsel %vm140, %v56, 0
    %144 = vmatprep.subr.mxu0 0.0
    %145 = vmatpush1.msra.mxu0 0.0
    %146 = vmatprep.subr.mxu0 0.0
    %147 = vmatpush1.msra.mxu0 0.0
    %148 = vmatprep.subr.mxu0 0.0
    %149 = vmatpush1.msra.mxu0 0.0
    %150 = vmatprep.subr.mxu0 0.0
    %151 = vmatpush1.msra.mxu0 0.0
    %152 = vmatprep.subr.mxu0 0.0
    %153 = vmatpush1.msra.mxu0 0.0
    %154 = vmatprep.subr.mxu0 0.0
    %155 = vmatpush1.msra.mxu0 0.0
    %156 = vmatprep.subr.mxu0 0.0
    %157 = vmatpush1.msra.mxu0 0.0
    %158 = vmatprep.subr.mxu0 0.0
    %159 = vmatpush1.msra.mxu0 0.0
    %160 = vmatprep.subr.mxu0 0.0
    %161 = vmatpush1.msra.mxu0 0.0
    %162 = vmatprep.subr.mxu0 0.0
    %163 = vmatpush1.msra.mxu0 0.0
    %164 = vmatprep.subr.mxu0 0.0
    %165 = vmatpush1.msra.mxu0 0.0
    %166 = vmatprep.subr.mxu0 0.0
    %167 = vmatpush1.msra.mxu0 0.0
    %168 = vmatprep.subr.mxu0 0.0
    %169 = vmatpush1.msra.mxu0 0.0
    %170 = vmatprep.subr.mxu0 0.0
    %171 = vmatpush1.msra.mxu0 0.0
    %172 = vmatprep.subr.mxu0 0.0
    %173 = vmatpush1.msra.mxu0 %v59
    %174 = vmatprep.subr.mxu0 0.0
    %175 = vmatpush1.msra.mxu0 %v58
    %176 = vmatprep.subr.mxu0 0.0
    %177 = vmatpush2.msra.mxu0 0.0
    %178 = vmatprep.subr.mxu0 0.0
    %179 = vmatpush2.msra.mxu0 0.0
    %180 = vmatprep.subr.mxu0 0.0
    %181 = vmatpush2.msra.mxu0 0.0
    %182 = vmatprep.subr.mxu0 0.0
    %183 = vmatpush2.msra.mxu0 0.0
    %184 = vmatprep.subr.mxu0 0.0
    %185 = vmatpush2.msra.mxu0 0.0
    %186 = vmatprep.subr.mxu0 0.0
    %187 = vmatpush2.msra.mxu0 0.0
    %188 = vmatprep.subr.mxu0 0.0
    %189 = vmatpush2.msra.mxu0 0.0
    %190 = vmatprep.subr.mxu0 0.0
    %191 = vmatpush2.msra.mxu0 0.0
    %192 = vmatprep.subr.mxu0 0.0
    %193 = vmatpush2.msra.mxu0 0.0
    %194 = vmatprep.subr.mxu0 0.0
    %195 = vmatpush2.msra.mxu0 0.0
    %196 = vmatprep.subr.mxu0 0.0
    %197 = vmatpush2.msra.mxu0 0.0
    %198 = vmatprep.subr.mxu0 0.0
    %199 = vmatpush2.msra.mxu0 0.0
    %200 = vmatprep.subr.mxu0 0.0
    %201 = vmatpush2.msra.mxu0 0.0
    %202 = vmatprep.subr.mxu0 0.0
    %203 = vmatpush2.msra.mxu0 0.0
    %204 = vmatprep.subr.mxu0 0.0
    %205 = vmatpush2.msra.mxu0 0.0
    %206 = vmatprep.subr.mxu0 0.0
    %207 = vmatpush2.msra.mxu0 0.0
    %208 = vmatprep.mubr.f32.mxu0 0.0
    %209 = vmatmul.mubr.f32.gmra.mxu0 %v142
    %v210 = vpop.f32.mrf.mxu0
    %v211 = vadd.f32 %v137, %v210
    %v212 = vpop.f32.mrf.mxu0
    %213 = vdwg.mxu0
    %v214 = vlaneseq
    %v215 = vshrl.u32 %v214, 7
    %v216 = vsub.s32 0, %v215
    %v217 = vrot.slane %v61, %v216
    %v218 = vadd.f32 %v211, %v217
    %v219 = vmax.f32 %v218, 0.0
    %v220 = vld [vmem:[#allocation7 + $0x18] sm:$0xff]
    %v221 = vld [vmem:[#allocation7 + $0x20] sm:$0xff]
    %v222 = vld [vmem:[#allocation7 + $0x28] sm:$0xff]
    %v223 = vld [vmem:[#allocation7 + $0x30] sm:$0xff]
    %v224 = vld [vmem:[#allocation7 + $0x38] sm:$0xff]
    %v225 = vld [vmem:[#allocation7 + $0x40] sm:$0xff]
    %v226 = vld [vmem:[#allocation7 + $0x48] sm:$0xff]
    %v227 = vld [vmem:[#allocation7 + $0x50] sm:$0xff]
    %v228 = vld [vmem:[#allocation7 + $0x58] sm:$0xff]
    %v229 = vld [vmem:[#allocation7 + $0x60] sm:$0xff]
    %v230 = vld [vmem:[#allocation7 + $0x68] sm:$0xff]
    %v231 = vld [vmem:[#allocation7 + $0x70] sm:$0xff]
    %v232 = vld [vmem:[#allocation7 + $0x78] sm:$0xff]
    %v233 = vld [vmem:[#allocation7 + $0x80] sm:$0xff]
    %v234 = vld [vmem:[#allocation7 + $0x88] sm:$0xff]
    %v235 = vld [vmem:[#allocation7 + $0x90] sm:$0xff]
    %v236 = vld [vmem:[#allocation7 + $0x199] sm:$0x1]
    %v237 = vlaneseq
    %v238 = vshrl.u32 %v237, 7
    %v239 = vsub.s32 0, %v238
    %v240 = vrot.slane %v236, %v239
    %241 = vmatprep.subr.mxu0 0.0
    %242 = vmatpush1.msra.mxu0 %v235
    %243 = vmatprep.subr.mxu0 0.0
    %244 = vmatpush1.msra.mxu0 %v234
    %245 = vmatprep.subr.mxu0 0.0
    %246 = vmatpush1.msra.mxu0 %v233
    %247 = vmatprep.subr.mxu0 0.0
    %248 = vmatpush1.msra.mxu0 %v232
    %249 = vmatprep.subr.mxu0 0.0
    %250 = vmatpush1.msra.mxu0 %v231
    %251 = vmatprep.subr.mxu0 0.0
    %252 = vmatpush1.msra.mxu0 %v230
    %253 = vmatprep.subr.mxu0 0.0
    %254 = vmatpush1.msra.mxu0 %v229
    %255 = vmatprep.subr.mxu0 0.0
    %256 = vmatpush1.msra.mxu0 %v228
    %257 = vmatprep.subr.mxu0 0.0
    %258 = vmatpush1.msra.mxu0 %v227
    %259 = vmatprep.subr.mxu0 0.0
    %260 = vmatpush1.msra.mxu0 %v226
    %261 = vmatprep.subr.mxu0 0.0
    %262 = vmatpush1.msra.mxu0 %v225
    %263 = vmatprep.subr.mxu0 0.0
    %264 = vmatpush1.msra.mxu0 %v224
    %265 = vmatprep.subr.mxu0 0.0
    %266 = vmatpush1.msra.mxu0 %v223
    %267 = vmatprep.subr.mxu0 0.0
    %268 = vmatpush1.msra.mxu0 %v222
    %269 = vmatprep.subr.mxu0 0.0
    %270 = vmatpush1.msra.mxu0 %v221
    %271 = vmatprep.subr.mxu0 0.0
    %272 = vmatpush1.msra.mxu0 %v220
    %273 = vmatprep.subr.mxu0 0.0
    %274 = vmatpush2.msra.mxu0 0.0
    %275 = vmatprep.subr.mxu0 0.0
    %276 = vmatpush2.msra.mxu0 0.0
    %277 = vmatprep.subr.mxu0 0.0
    %278 = vmatpush2.msra.mxu0 0.0
    %279 = vmatprep.subr.mxu0 0.0
    %280 = vmatpush2.msra.mxu0 0.0
    %281 = vmatprep.subr.mxu0 0.0
    %282 = vmatpush2.msra.mxu0 0.0
    %283 = vmatprep.subr.mxu0 0.0
    %284 = vmatpush2.msra.mxu0 0.0
    %285 = vmatprep.subr.mxu0 0.0
    %286 = vmatpush2.msra.mxu0 0.0
    %287 = vmatprep.subr.mxu0 0.0
    %288 = vmatpush2.msra.mxu0 0.0
    %289 = vmatprep.subr.mxu0 0.0
    %290 = vmatpush2.msra.mxu0 0.0
    %291 = vmatprep.subr.mxu0 0.0
    %292 = vmatpush2.msra.mxu0 0.0
    %293 = vmatprep.subr.mxu0 0.0
    %294 = vmatpush2.msra.mxu0 0.0
    %295 = vmatprep.subr.mxu0 0.0
    %296 = vmatpush2.msra.mxu0 0.0
    %297 = vmatprep.subr.mxu0 0.0
    %298 = vmatpush2.msra.mxu0 0.0
    %299 = vmatprep.subr.mxu0 0.0
    %300 = vmatpush2.msra.mxu0 0.0
    %301 = vmatprep.subr.mxu0 0.0
    %302 = vmatpush2.msra.mxu0 0.0
    %303 = vmatprep.subr.mxu0 0.0
    %304 = vmatpush2.msra.mxu0 0.0
    %305 = vmatprep.mubr.f32.mxu0 0.0
    %306 = vmatmul.mubr.f32.gmra.mxu0 %v219
    %v307 = vpop.f32.mrf.mxu0
    %v308 = vadd.f32 %v240, %v307
    %v309 = vpop.f32.mrf.mxu0
    %310 = vdwg.mxu0
    %v311 = vmax.f32 %v308, 0.0
    %v312 = vld [vmem:[#allocation7 + $0x98] sm:$0xff]
    %v313 = vld [vmem:[#allocation7 + $0xa0] sm:$0xff]
    %v314 = vld [vmem:[#allocation7 + $0xa8] sm:$0xff]
    %v315 = vld [vmem:[#allocation7 + $0xb0] sm:$0xff]
    %v316 = vld [vmem:[#allocation7 + $0xb8] sm:$0xff]
    %v317 = vld [vmem:[#allocation7 + $0xc0] sm:$0xff]
    %v318 = vld [vmem:[#allocation7 + $0xc8] sm:$0xff]
    %v319 = vld [vmem:[#allocation7 + $0xd0] sm:$0xff]
    %v320 = vld [vmem:[#allocation7 + $0xd8] sm:$0xff]
    %v321 = vld [vmem:[#allocation7 + $0xe0] sm:$0xff]
    %v322 = vld [vmem:[#allocation7 + $0xe8] sm:$0xff]
    %v323 = vld [vmem:[#allocation7 + $0xf0] sm:$0xff]
    %v324 = vld [vmem:[#allocation7 + $0xf8] sm:$0xff]
    %v325 = vld [vmem:[#allocation7 + $0x100] sm:$0xff]
    %v326 = vld [vmem:[#allocation7 + $0x108] sm:$0xff]
    %v327 = vld [vmem:[#allocation7 + $0x110] sm:$0xff]
    %v328 = vld [vmem:[#allocation7 + $0x19a] sm:$0x1]
    %v329 = vlaneseq
    %v330 = vshrl.u32 %v329, 7
    %v331 = vsub.s32 0, %v330
    %v332 = vrot.slane %v328, %v331
    %333 = vmatprep.subr.mxu0 0.0
    %334 = vmatpush1.msra.mxu0 %v327
    %335 = vmatprep.subr.mxu0 0.0
    %336 = vmatpush1.msra.mxu0 %v326
    %337 = vmatprep.subr.mxu0 0.0
    %338 = vmatpush1.msra.mxu0 %v325
    %339 = vmatprep.subr.mxu0 0.0
    %340 = vmatpush1.msra.mxu0 %v324
    %341 = vmatprep.subr.mxu0 0.0
    %342 = vmatpush1.msra.mxu0 %v323
    %343 = vmatprep.subr.mxu0 0.0
    %344 = vmatpush1.msra.mxu0 %v322
    %345 = vmatprep.subr.mxu0 0.0
    %346 = vmatpush1.msra.mxu0 %v321
    %347 = vmatprep.subr.mxu0 0.0
    %348 = vmatpush1.msra.mxu0 %v320
    %349 = vmatprep.subr.mxu0 0.0
    %350 = vmatpush1.msra.mxu0 %v319
    %351 = vmatprep.subr.mxu0 0.0
    %352 = vmatpush1.msra.mxu0 %v318
    %353 = vmatprep.subr.mxu0 0.0
    %354 = vmatpush1.msra.mxu0 %v317
    %355 = vmatprep.subr.mxu0 0.0
    %356 = vmatpush1.msra.mxu0 %v316
    %357 = vmatprep.subr.mxu0 0.0
    %358 = vmatpush1.msra.mxu0 %v315
    %359 = vmatprep.subr.mxu0 0.0
    %360 = vmatpush1.msra.mxu0 %v314
    %361 = vmatprep.subr.mxu0 0.0
    %362 = vmatpush1.msra.mxu0 %v313
    %363 = vmatprep.subr.mxu0 0.0
    %364 = vmatpush1.msra.mxu0 %v312
    %365 = vmatprep.subr.mxu0 0.0
    %366 = vmatpush2.msra.mxu0 0.0
    %367 = vmatprep.subr.mxu0 0.0
    %368 = vmatpush2.msra.mxu0 0.0
    %369 = vmatprep.subr.mxu0 0.0
    %370 = vmatpush2.msra.mxu0 0.0
    %371 = vmatprep.subr.mxu0 0.0
    %372 = vmatpush2.msra.mxu0 0.0
    %373 = vmatprep.subr.mxu0 0.0
    %374 = vmatpush2.msra.mxu0 0.0
    %375 = vmatprep.subr.mxu0 0.0
    %376 = vmatpush2.msra.mxu0 0.0
    %377 = vmatprep.subr.mxu0 0.0
    %378 = vmatpush2.msra.mxu0 0.0
    %379 = vmatprep.subr.mxu0 0.0
    %380 = vmatpush2.msra.mxu0 0.0
    %381 = vmatprep.subr.mxu0 0.0
    %382 = vmatpush2.msra.mxu0 0.0
    %383 = vmatprep.subr.mxu0 0.0
    %384 = vmatpush2.msra.mxu0 0.0
    %385 = vmatprep.subr.mxu0 0.0
    %386 = vmatpush2.msra.mxu0 0.0
    %387 = vmatprep.subr.mxu0 0.0
    %388 = vmatpush2.msra.mxu0 0.0
    %389 = vmatprep.subr.mxu0 0.0
    %390 = vmatpush2.msra.mxu0 0.0
    %391 = vmatprep.subr.mxu0 0.0
    %392 = vmatpush2.msra.mxu0 0.0
    %393 = vmatprep.subr.mxu0 0.0
    %394 = vmatpush2.msra.mxu0 0.0
    %395 = vmatprep.subr.mxu0 0.0
    %396 = vmatpush2.msra.mxu0 0.0
    %397 = vmatprep.mubr.f32.mxu0 0.0
    %398 = vmatmul.mubr.f32.gmra.mxu0 %v311
    %v399 = vpop.f32.mrf.mxu0
    %v400 = vadd.f32 %v332, %v399
    %v401 = vpop.f32.mrf.mxu0
    %402 = vdwg.mxu0
    %v403 = vmax.f32 %v400, 0.0
    %v404 = vld [vmem:[#allocation7 + $0x118] sm:$0xff]
    %v405 = vld [vmem:[#allocation7 + $0x120] sm:$0xff]
    %v406 = vld [vmem:[#allocation7 + $0x128] sm:$0xff]
    %v407 = vld [vmem:[#allocation7 + $0x130] sm:$0xff]
    %v408 = vld [vmem:[#allocation7 + $0x138] sm:$0xff]
    %v409 = vld [vmem:[#allocation7 + $0x140] sm:$0xff]
    %v410 = vld [vmem:[#allocation7 + $0x148] sm:$0xff]
    %v411 = vld [vmem:[#allocation7 + $0x150] sm:$0xff]
    %v412 = vld [vmem:[#allocation7 + $0x158] sm:$0xff]
    %v413 = vld [vmem:[#allocation7 + $0x160] sm:$0xff]
    %v414 = vld [vmem:[#allocation7 + $0x168] sm:$0xff]
    %v415 = vld [vmem:[#allocation7 + $0x170] sm:$0xff]
    %v416 = vld [vmem:[#allocation7 + $0x178] sm:$0xff]
    %v417 = vld [vmem:[#allocation7 + $0x180] sm:$0xff]
    %v418 = vld [vmem:[#allocation7 + $0x188] sm:$0xff]
    %v419 = vld [vmem:[#allocation7 + $0x190] sm:$0xff]
    %v420 = vld [vmem:[#allocation7 + $0x19b] sm:$0x1]
    %v421 = vlaneseq
    %v422 = vshrl.u32 %v421, 7
    %v423 = vsub.s32 0, %v422
    %v424 = vrot.slane %v420, %v423
    %425 = vmatprep.subr.mxu0 0.0
    %426 = vmatpush1.msra.mxu0 %v419
    %427 = vmatprep.subr.mxu0 0.0
    %428 = vmatpush1.msra.mxu0 %v418
    %429 = vmatprep.subr.mxu0 0.0
    %430 = vmatpush1.msra.mxu0 %v417
    %431 = vmatprep.subr.mxu0 0.0
    %432 = vmatpush1.msra.mxu0 %v416
    %433 = vmatprep.subr.mxu0 0.0
    %434 = vmatpush1.msra.mxu0 %v415
    %435 = vmatprep.subr.mxu0 0.0
    %436 = vmatpush1.msra.mxu0 %v414
    %437 = vmatprep.subr.mxu0 0.0
    %438 = vmatpush1.msra.mxu0 %v413
    %439 = vmatprep.subr.mxu0 0.0
    %440 = vmatpush1.msra.mxu0 %v412
    %441 = vmatprep.subr.mxu0 0.0
    %442 = vmatpush1.msra.mxu0 %v411
    %443 = vmatprep.subr.mxu0 0.0
    %444 = vmatpush1.msra.mxu0 %v410
    %445 = vmatprep.subr.mxu0 0.0
    %446 = vmatpush1.msra.mxu0 %v409
    %447 = vmatprep.subr.mxu0 0.0
    %448 = vmatpush1.msra.mxu0 %v408
    %449 = vmatprep.subr.mxu0 0.0
    %450 = vmatpush1.msra.mxu0 %v407
    %451 = vmatprep.subr.mxu0 0.0
    %452 = vmatpush1.msra.mxu0 %v406
    %453 = vmatprep.subr.mxu0 0.0
    %454 = vmatpush1.msra.mxu0 %v405
    %455 = vmatprep.subr.mxu0 0.0
    %456 = vmatpush1.msra.mxu0 %v404
    %457 = vmatprep.subr.mxu0 0.0
    %458 = vmatpush2.msra.mxu0 0.0
    %459 = vmatprep.subr.mxu0 0.0
    %460 = vmatpush2.msra.mxu0 0.0
    %461 = vmatprep.subr.mxu0 0.0
    %462 = vmatpush2.msra.mxu0 0.0
    %463 = vmatprep.subr.mxu0 0.0
    %464 = vmatpush2.msra.mxu0 0.0
    %465 = vmatprep.subr.mxu0 0.0
    %466 = vmatpush2.msra.mxu0 0.0
    %467 = vmatprep.subr.mxu0 0.0
    %468 = vmatpush2.msra.mxu0 0.0
    %469 = vmatprep.subr.mxu0 0.0
    %470 = vmatpush2.msra.mxu0 0.0
    %471 = vmatprep.subr.mxu0 0.0
    %472 = vmatpush2.msra.mxu0 0.0
    %473 = vmatprep.subr.mxu0 0.0
    %474 = vmatpush2.msra.mxu0 0.0
    %475 = vmatprep.subr.mxu0 0.0
    %476 = vmatpush2.msra.mxu0 0.0
    %477 = vmatprep.subr.mxu0 0.0
    %478 = vmatpush2.msra.mxu0 0.0
    %479 = vmatprep.subr.mxu0 0.0
    %480 = vmatpush2.msra.mxu0 0.0
    %481 = vmatprep.subr.mxu0 0.0
    %482 = vmatpush2.msra.mxu0 0.0
    %483 = vmatprep.subr.mxu0 0.0
    %484 = vmatpush2.msra.mxu0 0.0
    %485 = vmatprep.subr.mxu0 0.0
    %486 = vmatpush2.msra.mxu0 0.0
    %487 = vmatprep.subr.mxu0 0.0
    %488 = vmatpush2.msra.mxu0 0.0
    %489 = vmatprep.mubr.f32.mxu0 0.0
    %490 = vmatmul.mubr.f32.gmra.mxu0 %v403
    %v491 = vpop.f32.mrf.mxu0
    %v492 = vadd.f32 %v424, %v491
    %v493 = vpop.f32.mrf.mxu0
    %494 = vdwg.mxu0
    %495 = vst [vmem:[#allocation8] sm:$0xff] %v492
    // Predicated region
    $region26: #{tpu_custom_call.1} parent=1 // pred_check
      _
    $region27: #{tpu_custom_call.1} parent=1 // pred_check_branch
      %497 = sbr.rel (0) target = $region29
    $region28: #{tpu_custom_call.1} parent=1 // pred_region
      %s499 = ssub.s32 128, 32
      %500 = vsyncadd [#allocation4], %s499
      %s501 = sshll.u32 [#allocation8], 4
      %s502 = int_to_ptr.vmem [resolvable:$true] %s501
      %507 = dma.vmem_to_hbm [thread:$0]  %s502, 32, %s3, [#allocation4], 32, 32, 2
    $region29: #{tpu_custom_call.1} parent=1 // pred_fallthru
      _
    // Predicated region
    $region30: #{tpu_custom_call.1} parent=1 // pred_check
      _
    $region31: #{tpu_custom_call.1} parent=1 // pred_check_branch
      %509 = sbr.rel (0) target = $region33
    $region32: #{tpu_custom_call.1} parent=1 // pred_region
      %510 = dma.done [#allocation4], 128
    $region33: #{tpu_custom_call.1} parent=1 // pred_fallthru
      _
    %511 = vsyncpa [#allocation3], 1
    %512 = vsyncpa [#allocation6], 1
    %513 = vsyncpa [#allocation4], 1

</llo_original>
